<compile_context>
chip_gen: v6e
topology: v6e:2x2x1
jax: 0.10.0
libtpu: 0.0.40
codegen_flags: <defaults>
</compile_context>

<pallas_src>
import functools

import jax
import jax.numpy as jnp
from jax.experimental import pallas as pl
from jax.experimental.pallas import tpu as pltpu


def _chamfer_kernel(img_ref, txt_ref, sd_ref, diag_ref, scal_ref, *,
                    margin, max_violation, num_embeds, batch):
    """img_ref/txt_ref: (B, K, D) f32 in VMEM.

    Outputs:
      sd_ref   : (B, B)  f32  setwise chamfer distance
      diag_ref : (B, 1)  f32  diagonal of sd (torch `diagonal`)
      scal_ref : (1, 4)  f32  [i2t_loss, t2i_loss, img_emb_norm, txt_emb_norm]
    """
    K, B = num_embeds, batch

    # --- in-kernel K-major relayout from static slices (no wrapper transpose) ---
    # row index = ki*B + bi  /  kt*B + bt ; segments of width B stay contiguous.
    img_f32 = jnp.concatenate([img_ref[:, ki, :] for ki in range(K)], axis=0)  # (K*B, D)
    txt_f32 = jnp.concatenate([txt_ref[:, kt, :] for kt in range(K)], axis=0)  # (K*B, D)

    # --- exact f32 embedding-norm bookkeeping (torch: .norm(dim=1).mean()) ---
    img_norm = jnp.mean(jnp.sqrt(jnp.sum(img_f32 * img_f32, axis=-1, keepdims=True)),
                        keepdims=True)                                          # (1, 1)
    txt_norm = jnp.mean(jnp.sqrt(jnp.sum(txt_f32 * txt_f32, axis=-1, keepdims=True)),
                        keepdims=True)                                          # (1, 1)

    # --- single fused MXU matmul: bf16 operands, f32 accumulation ---
    img_bf = img_f32.astype(jnp.bfloat16)
    txt_bf = txt_f32.astype(jnp.bfloat16)
    dist = jax.lax.dot_general(
        img_bf, txt_bf, (((1,), (1,)), ((), ())),
        preferred_element_type=jnp.float32)                                     # (K*B, K*B)

    # --- chamfer pooling on contiguous B-wide segments (static slices) ---
    # right[bi, bt] = sum_ki max_kt dist    (MaxPool2d((1,K)) -> LPPool2d((K,1)))
    mx_kt = dist[:, 0:B]
    for kt in range(1, K):
        mx_kt = jnp.maximum(mx_kt, dist[:, kt * B:(kt + 1) * B])                # (K*B, B)
    right = mx_kt[0:B, :]
    for ki in range(1, K):
        right = right + mx_kt[ki * B:(ki + 1) * B, :]                           # (B, B)

    # left[bi, bt] = sum_kt max_ki dist     (MaxPool2d((K,1)) -> LPPool2d((1,K)))
    mx_ki = dist[0:B, :]
    for ki in range(1, K):
        mx_ki = jnp.maximum(mx_ki, dist[ki * B:(ki + 1) * B, :])                # (B, K*B)
    left = mx_ki[:, 0:B]
    for kt in range(1, K):
        left = left + mx_ki[:, kt * B:(kt + 1) * B]                             # (B, B)

    sd = (right + left) * (1.0 / (2.0 * K))                                     # setwise_dist
    sd_ref[...] = sd

    # --- triplet ranking losses (elementwise + reductions, all in-kernel) ---
    row_ids = jax.lax.broadcasted_iota(jnp.int32, (B, B), 0)
    col_ids = jax.lax.broadcasted_iota(jnp.int32, (B, B), 1)
    eye = row_ids == col_ids

    diag_only = jnp.where(eye, sd, 0.0)                       # masked once, shared
    diag_col = jnp.sum(diag_only, axis=1, keepdims=True)      # (B, 1): sd[bi, bi]
    diag_row = jnp.sum(diag_only, axis=0, keepdims=True)      # (1, B): sd[bt, bt]
    diag_ref[...] = diag_col

    i2t_mat = jnp.where(eye, 0.0, jnp.maximum(margin + sd - diag_col, 0.0))
    t2i_mat = jnp.where(eye, 0.0, jnp.maximum(margin + sd - diag_row, 0.0))

    if max_violation:
        # torch: loss.max(dim)[0] followed by .mean()  (mean of the maxima)
        i2t_loss = jnp.mean(jnp.max(i2t_mat, axis=1, keepdims=True), keepdims=True)
        t2i_loss = jnp.mean(jnp.max(t2i_mat, axis=0, keepdims=True), keepdims=True)
    else:
        i2t_loss = jnp.mean(i2t_mat, keepdims=True)           # (1, 1)
        t2i_loss = jnp.mean(t2i_mat, keepdims=True)           # (1, 1)

    # --- pack all scalars into one (1, 4) store: pure VPU selects, one vst ---
    lane = jax.lax.broadcasted_iota(jnp.int32, (1, 4), 1)
    scal_ref[...] = (jnp.where(lane == 0, i2t_loss, 0.0)
                     + jnp.where(lane == 1, t2i_loss, 0.0)
                     + jnp.where(lane == 2, img_norm, 0.0)
                     + jnp.where(lane == 3, txt_norm, 0.0))


@functools.partial(jax.jit, static_argnames=(
    "margin", "num_embeds", "i2t_weight", "t2i_weight", "max_violation",
    "mmd_weight", "div_weight"))
def chamfer_loss_forward(img_embs, txt_embs, img_r, txt_r, *,
                         margin=0.2, num_embeds=2, i2t_weight=1.0,
                         t2i_weight=1.0, max_violation=False,
                         mmd_weight=0.0, div_weight=0.0):
    """Mirrors ChamferLoss.forward (smooth=False); one pallas_call, one launch."""
    B, K, D = img_embs.shape
    assert K == num_embeds

    kernel = functools.partial(_chamfer_kernel, margin=float(margin),
                               max_violation=bool(max_violation),
                               num_embeds=K, batch=B)

    sd, diagonal, scalars = pl.pallas_call(
        kernel,
        out_shape=(jax.ShapeDtypeStruct((B, B), jnp.float32),
                   jax.ShapeDtypeStruct((B, 1), jnp.float32),
                   jax.ShapeDtypeStruct((1, 4), jnp.float32)),
        in_specs=[pl.BlockSpec(memory_space=pltpu.MemorySpace.VMEM),
                  pl.BlockSpec(memory_space=pltpu.MemorySpace.VMEM)],
        out_specs=(pl.BlockSpec(memory_space=pltpu.MemorySpace.VMEM),
                   pl.BlockSpec(memory_space=pltpu.MemorySpace.VMEM),
                   pl.BlockSpec(memory_space=pltpu.MemorySpace.VMEM)),
    )(img_embs, txt_embs)

    i2t_loss = scalars[0, 0]
    t2i_loss = scalars[0, 1]
    img_emb_norm = scalars[0, 2]
    txt_emb_norm = scalars[0, 3]

    loss = i2t_weight * i2t_loss + t2i_weight * t2i_loss
    # TODO(synk): diversity_loss / mmd_rbf_loss branches are inactive because
    # div_weight == mmd_weight == 0.0 (same guard as the torch forward); img_r /
    # txt_r are therefore unused, matching the reference semantics for this config.

    losses = {'i2t_loss': i2t_loss, 't2i_loss': t2i_loss}
    debug = {
        'i2t_pos': jnp.broadcast_to(diagonal, (B, B)),
        't2i_pos': jnp.broadcast_to(diagonal.T, (B, B)),
        'setwise_dist': sd,
        'mask': jnp.eye(B, dtype=bool),
        'diagonal': diagonal,
        'img_emb_norm': img_emb_norm,
        'txt_emb_norm': txt_emb_norm,
    }
    return loss, losses, debug


def _reference_forward(img_embs, txt_embs, *, margin, i2t_weight, t2i_weight):
    """Pure-JAX reference of the torch forward (smooth=False, max_violation=False).

    The similarity matmul uses bf16-rounded operands to match the kernel's MXU
    operand precision (accumulation stays f32); the norms are exact f32."""
    B, K, D = img_embs.shape
    ie = img_embs.astype(jnp.bfloat16).astype(jnp.float32).reshape(-1, D)
    te = txt_embs.astype(jnp.bfloat16).astype(jnp.float32).reshape(-1, D)
    dist = ie @ te.T
    d4 = dist.reshape(B, K, B, K)
    right = d4.max(axis=3).sum(axis=1)
    left = d4.max(axis=1).sum(axis=2)
    sd = (right + left) / (2.0 * K)
    diag = jnp.diag(sd)
    eye = jnp.eye(B, dtype=bool)
    i2t_mat = jnp.where(eye, 0.0, jnp.maximum(margin + sd - diag[:, None], 0.0))
    t2i_mat = jnp.where(eye, 0.0, jnp.maximum(margin + sd - diag[None, :], 0.0))
    i2t_loss = jnp.mean(i2t_mat)
    t2i_loss = jnp.mean(t2i_mat)
    img_norm = jnp.mean(jnp.linalg.norm(img_embs.reshape(-1, D), axis=1))
    txt_norm = jnp.mean(jnp.linalg.norm(txt_embs.reshape(-1, D), axis=1))
    return (i2t_weight * i2t_loss + t2i_weight * t2i_loss, sd, i2t_loss,
            t2i_loss, img_norm, txt_norm)


if __name__ == "__main__":
    B, K, D = 8, 2, 32   # batch, num_embeds, embed dim
    key = jax.random.PRNGKey(0)
    k1, k2, k3, k4 = jax.random.split(key, 4)

    def l2norm(x):
        return x / jnp.linalg.norm(x, axis=-1, keepdims=True)

    img_embs = l2norm(jax.random.normal(k1, (B, K, D), dtype=jnp.float32))
    txt_embs = l2norm(jax.random.normal(k2, (B, K, D), dtype=jnp.float32))
    img_r = jax.random.normal(k3, (B, K, D), dtype=jnp.float32)
    txt_r = jax.random.normal(k4, (B, K, D), dtype=jnp.float32)

    loss, losses, debug = chamfer_loss_forward(
        img_embs, txt_embs, img_r, txt_r,
        margin=0.2, num_embeds=K, i2t_weight=1.0, t2i_weight=1.0,
        max_violation=False)
    jax.block_until_ready((loss, losses, debug))

    # sanity-check against a pure-JAX reference of the torch math
    ref_loss, ref_sd, ref_i2t, ref_t2i, ref_inorm, ref_tnorm = _reference_forward(
        img_embs, txt_embs, margin=0.2, i2t_weight=1.0, t2i_weight=1.0)
    assert jnp.allclose(debug['setwise_dist'], ref_sd, rtol=2e-3, atol=2e-3)
    assert jnp.allclose(debug['diagonal'].reshape(-1), jnp.diag(ref_sd),
                        rtol=2e-3, atol=2e-3)
    assert jnp.allclose(losses['i2t_loss'], ref_i2t, rtol=2e-3, atol=2e-3)
    assert jnp.allclose(losses['t2i_loss'], ref_t2i, rtol=2e-3, atol=2e-3)
    assert jnp.allclose(loss, ref_loss, rtol=2e-3, atol=2e-3)
    assert jnp.allclose(debug['img_emb_norm'], ref_inorm, rtol=1e-5, atol=1e-5)
    assert jnp.allclose(debug['txt_emb_norm'], ref_tnorm, rtol=1e-5, atol=1e-5)

    print("KERNEL_OK")
</pallas_src>

<mosaic_0001>
module attributes {stable_mosaic.version = 11 : i64} {
  func.func @_chamfer_kernel(%arg0: memref<8x2x32xf32, #tpu.memory_space<vmem>>, %arg1: memref<8x2x32xf32, #tpu.memory_space<vmem>>, %arg2: memref<8x8xf32, #tpu.memory_space<vmem>>, %arg3: memref<8x1xf32, #tpu.memory_space<vmem>>, %arg4: memref<1x4xf32, #tpu.memory_space<vmem>>) attributes {dimension_semantics = [], scalar_prefetch = 0 : i64, scratch_operands = 0 : i64, tpu.core_type = #tpu.core_type<tc>} {
    %c0 = arith.constant 0 : index
    %c0_0 = arith.constant 0 : index
    %c0_1 = arith.constant 0 : index
    %0 = vector.load %arg0[%c0, %c0_0, %c0_1] : memref<8x2x32xf32, #tpu.memory_space<vmem>>, vector<8x1x32xf32>
    %1 = vector.shape_cast %0 : vector<8x1x32xf32> to vector<8x32xf32>
    %c0_2 = arith.constant 0 : index
    %c1 = arith.constant 1 : index
    %c0_3 = arith.constant 0 : index
    %2 = vector.load %arg0[%c0_2, %c1, %c0_3] : memref<8x2x32xf32, #tpu.memory_space<vmem>>, vector<8x1x32xf32>
    %3 = vector.shape_cast %2 : vector<8x1x32xf32> to vector<8x32xf32>
    %4 = tpu.concatenate %1, %3 in 0 : vector<8x32xf32>, vector<8x32xf32> -> vector<16x32xf32>
    %c0_4 = arith.constant 0 : index
    %c0_5 = arith.constant 0 : index
    %c0_6 = arith.constant 0 : index
    %5 = vector.load %arg1[%c0_4, %c0_5, %c0_6] : memref<8x2x32xf32, #tpu.memory_space<vmem>>, vector<8x1x32xf32>
    %6 = vector.shape_cast %5 : vector<8x1x32xf32> to vector<8x32xf32>
    %c0_7 = arith.constant 0 : index
    %c1_8 = arith.constant 1 : index
    %c0_9 = arith.constant 0 : index
    %7 = vector.load %arg1[%c0_7, %c1_8, %c0_9] : memref<8x2x32xf32, #tpu.memory_space<vmem>>, vector<8x1x32xf32>
    %8 = vector.shape_cast %7 : vector<8x1x32xf32> to vector<8x32xf32>
    %9 = tpu.concatenate %6, %8 in 0 : vector<8x32xf32>, vector<8x32xf32> -> vector<16x32xf32>
    %10 = arith.mulf %4, %4 : vector<16x32xf32>
    %cst = arith.constant dense<0.000000e+00> : vector<16xf32>
    %11 = vector.multi_reduction <add>, %10, %cst [1] : vector<16x32xf32> to vector<16xf32>
    %12 = vector.shape_cast %11 : vector<16xf32> to vector<16x1xf32>
    %13 = math.sqrt %12 : vector<16x1xf32>
    %14 = vector.shape_cast %13 : vector<16x1xf32> to vector<1x16x1xf32>
    %cst_10 = arith.constant dense<0.000000e+00> : vector<1xf32>
    %15 = vector.multi_reduction <add>, %14, %cst_10 [1, 2] : vector<1x16x1xf32> to vector<1xf32>
    %16 = vector.shape_cast %15 : vector<1xf32> to vector<1x1x1xf32>
    %17 = vector.extract %16[0, 0, 0] : f32 from vector<1x1x1xf32>
    %18 = vector.broadcast %17 : f32 to vector<1x1xf32>
    %cst_11 = arith.constant 1.600000e+01 : f32
    %19 = vector.broadcast %cst_11 : f32 to vector<1x1xf32>
    %20 = arith.divf %18, %19 : vector<1x1xf32>
    %21 = arith.mulf %9, %9 : vector<16x32xf32>
    %cst_12 = arith.constant dense<0.000000e+00> : vector<16xf32>
    %22 = vector.multi_reduction <add>, %21, %cst_12 [1] : vector<16x32xf32> to vector<16xf32>
    %23 = vector.shape_cast %22 : vector<16xf32> to vector<16x1xf32>
    %24 = math.sqrt %23 : vector<16x1xf32>
    %25 = vector.shape_cast %24 : vector<16x1xf32> to vector<1x16x1xf32>
    %cst_13 = arith.constant dense<0.000000e+00> : vector<1xf32>
    %26 = vector.multi_reduction <add>, %25, %cst_13 [1, 2] : vector<1x16x1xf32> to vector<1xf32>
    %27 = vector.shape_cast %26 : vector<1xf32> to vector<1x1x1xf32>
    %28 = vector.extract %27[0, 0, 0] : f32 from vector<1x1x1xf32>
    %29 = vector.broadcast %28 : f32 to vector<1x1xf32>
    %cst_14 = arith.constant 1.600000e+01 : f32
    %30 = vector.broadcast %cst_14 : f32 to vector<1x1xf32>
    %31 = arith.divf %29, %30 : vector<1x1xf32>
    %32 = arith.truncf %4 : vector<16x32xf32> to vector<16x32xbf16>
    %33 = arith.truncf %9 : vector<16x32xf32> to vector<16x32xbf16>
    %cst_15 = arith.constant dense<0.000000e+00> : vector<16x16xf32>
    %34 = tpu.matmul %32, %33, %cst_15 {dimension_numbers = #tpu.dot_dimension_numbers<[1], [1], [0], [0], [0, 0, 1, 0], [], []>} : vector<16x32xbf16>, vector<16x32xbf16>, vector<16x16xf32> -> vector<16x16xf32>
    %35 = vector.extract_strided_slice %34 {offsets = [0, 0], sizes = [16, 8], strides = [1, 1]} : vector<16x16xf32> to vector<16x8xf32>
    %36 = vector.extract_strided_slice %34 {offsets = [0, 8], sizes = [16, 8], strides = [1, 1]} : vector<16x16xf32> to vector<16x8xf32>
    %37 = arith.maximumf %35, %36 : vector<16x8xf32>
    %38 = vector.extract_strided_slice %37 {offsets = [0, 0], sizes = [8, 8], strides = [1, 1]} : vector<16x8xf32> to vector<8x8xf32>
    %39 = vector.extract_strided_slice %37 {offsets = [8, 0], sizes = [8, 8], strides = [1, 1]} : vector<16x8xf32> to vector<8x8xf32>
    %40 = arith.addf %38, %39 : vector<8x8xf32>
    %41 = vector.extract_strided_slice %34 {offsets = [0, 0], sizes = [8, 16], strides = [1, 1]} : vector<16x16xf32> to vector<8x16xf32>
    %42 = vector.extract_strided_slice %34 {offsets = [8, 0], sizes = [8, 16], strides = [1, 1]} : vector<16x16xf32> to vector<8x16xf32>
    %43 = arith.maximumf %41, %42 : vector<8x16xf32>
    %44 = vector.extract_strided_slice %43 {offsets = [0, 0], sizes = [8, 8], strides = [1, 1]} : vector<8x16xf32> to vector<8x8xf32>
    %45 = vector.extract_strided_slice %43 {offsets = [0, 8], sizes = [8, 8], strides = [1, 1]} : vector<8x16xf32> to vector<8x8xf32>
    %46 = arith.addf %44, %45 : vector<8x8xf32>
    %47 = arith.addf %40, %46 : vector<8x8xf32>
    %cst_16 = arith.constant 2.500000e-01 : f32
    %48 = vector.broadcast %cst_16 : f32 to vector<8x8xf32>
    %49 = arith.mulf %47, %48 : vector<8x8xf32>
    %c0_17 = arith.constant 0 : index
    %c0_18 = arith.constant 0 : index
    %50 = vector.load %arg2[%c0_17, %c0_18] : memref<8x8xf32, #tpu.memory_space<vmem>>, vector<8x8xf32>
    tpu.vector_store %arg2[%c0_17, %c0_18], %49 {strides = array<i32>} : memref<8x8xf32, #tpu.memory_space<vmem>>, vector<8x8xf32>,
    %51 = tpu.iota {dimensions = array<i32: 0>} : vector<8x8xi32>
    %52 = tpu.iota {dimensions = array<i32: 1>} : vector<8x8xi32>
    %53 = arith.cmpi eq, %51, %52 : vector<8x8xi32>
    %cst_19 = arith.constant 0.000000e+00 : f32
    %54 = vector.broadcast %cst_19 : f32 to vector<8x8xf32>
    %55 = arith.select %53, %49, %54 : vector<8x8xi1>, vector<8x8xf32>
    %cst_20 = arith.constant dense<0.000000e+00> : vector<8xf32>
    %56 = vector.multi_reduction <add>, %55, %cst_20 [1] : vector<8x8xf32> to vector<8xf32>
    %57 = vector.shape_cast %56 : vector<8xf32> to vector<8x1xf32>
    %cst_21 = arith.constant dense<0.000000e+00> : vector<8xf32>
    %58 = vector.multi_reduction <add>, %55, %cst_21 [0] : vector<8x8xf32> to vector<8xf32>
    %59 = vector.shape_cast %58 : vector<8xf32> to vector<1x8xf32>
    %c0_22 = arith.constant 0 : index
    %c0_23 = arith.constant 0 : index
    %60 = vector.load %arg3[%c0_22, %c0_23] : memref<8x1xf32, #tpu.memory_space<vmem>>, vector<8x1xf32>
    tpu.vector_store %arg3[%c0_22, %c0_23], %57 {strides = array<i32>} : memref<8x1xf32, #tpu.memory_space<vmem>>, vector<8x1xf32>,
    %cst_24 = arith.constant 2.000000e-01 : f32
    %61 = vector.broadcast %cst_24 : f32 to vector<8x8xf32>
    %62 = arith.addf %61, %49 : vector<8x8xf32>
    %63 = vector.broadcast %57 : vector<8x1xf32> to vector<8x8xf32>
    %64 = arith.subf %62, %63 : vector<8x8xf32>
    %cst_25 = arith.constant 0.000000e+00 : f32
    %65 = vector.broadcast %cst_25 : f32 to vector<8x8xf32>
    %66 = arith.maximumf %64, %65 : vector<8x8xf32>
    %cst_26 = arith.constant 0.000000e+00 : f32
    %67 = vector.broadcast %cst_26 : f32 to vector<8x8xf32>
    %68 = arith.select %53, %67, %66 : vector<8x8xi1>, vector<8x8xf32>
    %cst_27 = arith.constant 2.000000e-01 : f32
    %69 = vector.broadcast %cst_27 : f32 to vector<8x8xf32>
    %70 = arith.addf %69, %49 : vector<8x8xf32>
    %71 = vector.broadcast %59 : vector<1x8xf32> to vector<8x8xf32>
    %72 = arith.subf %70, %71 : vector<8x8xf32>
    %cst_28 = arith.constant 0.000000e+00 : f32
    %73 = vector.broadcast %cst_28 : f32 to vector<8x8xf32>
    %74 = arith.maximumf %72, %73 : vector<8x8xf32>
    %cst_29 = arith.constant 0.000000e+00 : f32
    %75 = vector.broadcast %cst_29 : f32 to vector<8x8xf32>
    %76 = arith.select %53, %75, %74 : vector<8x8xi1>, vector<8x8xf32>
    %77 = vector.shape_cast %68 : vector<8x8xf32> to vector<1x8x8xf32>
    %cst_30 = arith.constant dense<0.000000e+00> : vector<1xf32>
    %78 = vector.multi_reduction <add>, %77, %cst_30 [1, 2] : vector<1x8x8xf32> to vector<1xf32>
    %79 = vector.shape_cast %78 : vector<1xf32> to vector<1x1x1xf32>
    %80 = vector.extract %79[0, 0, 0] : f32 from vector<1x1x1xf32>
    %81 = vector.broadcast %80 : f32 to vector<1x1xf32>
    %cst_31 = arith.constant 6.400000e+01 : f32
    %82 = vector.broadcast %cst_31 : f32 to vector<1x1xf32>
    %83 = arith.divf %81, %82 : vector<1x1xf32>
    %84 = vector.shape_cast %76 : vector<8x8xf32> to vector<1x8x8xf32>
    %cst_32 = arith.constant dense<0.000000e+00> : vector<1xf32>
    %85 = vector.multi_reduction <add>, %84, %cst_32 [1, 2] : vector<1x8x8xf32> to vector<1xf32>
    %86 = vector.shape_cast %85 : vector<1xf32> to vector<1x1x1xf32>
    %87 = vector.extract %86[0, 0, 0] : f32 from vector<1x1x1xf32>
    %88 = vector.broadcast %87 : f32 to vector<1x1xf32>
    %cst_33 = arith.constant 6.400000e+01 : f32
    %89 = vector.broadcast %cst_33 : f32 to vector<1x1xf32>
    %90 = arith.divf %88, %89 : vector<1x1xf32>
    %91 = tpu.iota {dimensions = array<i32: 1>} : vector<1x4xi32>
    %c0_i32 = arith.constant 0 : i32
    %92 = vector.broadcast %c0_i32 : i32 to vector<1x4xi32>
    %93 = arith.cmpi eq, %91, %92 : vector<1x4xi32>
    %cst_34 = arith.constant 0.000000e+00 : f32
    %94 = vector.shape_cast %83 : vector<1x1xf32> to vector<1x1xf32>
    %95 = vector.broadcast %94 : vector<1x1xf32> to vector<1x4xf32>
    %96 = vector.broadcast %cst_34 : f32 to vector<1x4xf32>
    %97 = arith.select %93, %95, %96 : vector<1x4xi1>, vector<1x4xf32>
    %c1_i32 = arith.constant 1 : i32
    %98 = vector.broadcast %c1_i32 : i32 to vector<1x4xi32>
    %99 = arith.cmpi eq, %91, %98 : vector<1x4xi32>
    %cst_35 = arith.constant 0.000000e+00 : f32
    %100 = vector.shape_cast %90 : vector<1x1xf32> to vector<1x1xf32>
    %101 = vector.broadcast %100 : vector<1x1xf32> to vector<1x4xf32>
    %102 = vector.broadcast %cst_35 : f32 to vector<1x4xf32>
    %103 = arith.select %99, %101, %102 : vector<1x4xi1>, vector<1x4xf32>
    %104 = arith.addf %97, %103 : vector<1x4xf32>
    %c2_i32 = arith.constant 2 : i32
    %105 = vector.broadcast %c2_i32 : i32 to vector<1x4xi32>
    %106 = arith.cmpi eq, %91, %105 : vector<1x4xi32>
    %cst_36 = arith.constant 0.000000e+00 : f32
    %107 = vector.shape_cast %20 : vector<1x1xf32> to vector<1x1xf32>
    %108 = vector.broadcast %107 : vector<1x1xf32> to vector<1x4xf32>
    %109 = vector.broadcast %cst_36 : f32 to vector<1x4xf32>
    %110 = arith.select %106, %108, %109 : vector<1x4xi1>, vector<1x4xf32>
    %111 = arith.addf %104, %110 : vector<1x4xf32>
    %c3_i32 = arith.constant 3 : i32
    %112 = vector.broadcast %c3_i32 : i32 to vector<1x4xi32>
    %113 = arith.cmpi eq, %91, %112 : vector<1x4xi32>
    %cst_37 = arith.constant 0.000000e+00 : f32
    %114 = vector.shape_cast %31 : vector<1x1xf32> to vector<1x1xf32>
    %115 = vector.broadcast %114 : vector<1x1xf32> to vector<1x4xf32>
    %116 = vector.broadcast %cst_37 : f32 to vector<1x4xf32>
    %117 = arith.select %113, %115, %116 : vector<1x4xi1>, vector<1x4xf32>
    %118 = arith.addf %111, %117 : vector<1x4xf32>
    %c0_38 = arith.constant 0 : index
    %c0_39 = arith.constant 0 : index
    %119 = vector.load %arg4[%c0_38, %c0_39] : memref<1x4xf32, #tpu.memory_space<vmem>>, vector<1x4xf32>
    tpu.vector_store %arg4[%c0_38, %c0_39], %118 {strides = array<i32>} : memref<1x4xf32, #tpu.memory_space<vmem>>, vector<1x4xf32>,
    return
  }
}

</mosaic_0001>

<llo_original>
// kernel: chamfer_loss_forward.1
$region0: #{chamfer_loss_forward.1}
  #allocation0 [shape = 'u32[]', space=smem, size = 0x4, offset = 0x4, fixed_abs, tag = 'smem constant byte address 0x4 - core index']
  #allocation1 [shape = 'u32[144,128]{1,0:T(1,128)}', space=vmem, size = 0x12000, scoped, tag = 'internal scratch']
  %s0 = inlined_call_operand.hbm [shape: f32[8,2,32], index: 0, kind: input, shape index: {}]
  %s1 = inlined_call_operand.hbm [shape: f32[8,2,32], index: 1, kind: input, shape index: {}]
  %s2 = inlined_call_operand.hbm [shape: f32[8,8], index: 2, kind: output, shape index: {0}]
  %s3 = inlined_call_operand.vmem [shape: f32[8,1], index: 3, kind: output, shape index: {1}]
  %s4 = inlined_call_operand.vmem [shape: f32[1,4], index: 4, kind: output, shape index: {2}]
  %5 = xla_tuple %s2, %s3, %s4
  %s6 = sld [smem:[#allocation0]]
  $region42: #{chamfer_loss_forward.1} parent=0
    _
  %s8 = ssub.s32 1, %s6
  %s9 = scalar_select 0, %s8, %s6
  $region1: #{chamfer_loss_forward.1} parent=0
    #allocation2 [shape = 'u8[8192]{0}', space=vmem, size = 0x2000, scoped, tag = 'input window, operand 0, single buffered']
    #allocation3 [shape = 's32[1]{0}', space=sflag, size = 0x4, scoped, tag = 'scoped memory for chamfer_loss_forward.1']
    #allocation4 [shape = 's32[1]{0}', space=sflag, size = 0x4, scoped, tag = 'scoped memory for chamfer_loss_forward.1']
    #allocation5 [shape = 'u8[8192]{0}', space=vmem, size = 0x2000, scoped, tag = 'input window, operand 1, single buffered']
    #allocation6 [shape = 's32[1]{0}', space=sflag, size = 0x4, scoped, tag = 'scoped memory for chamfer_loss_forward.1']
    #allocation7 [shape = 'u8[4096]{0}', space=vmem, size = 0x1000, scoped, tag = 'output window, operand 0, single buffered']
    %10 = vsyncpa [#allocation3], 0
    %11 = vsyncpa [#allocation6], 0
    %12 = vsyncpa [#allocation4], 0
    // Predicated region
    $region2: #{chamfer_loss_forward.1} parent=1 // pred_check
      _
    $region3: #{chamfer_loss_forward.1} parent=1 // pred_check_branch
      %14 = sbr.rel (0) target = $region5
    $region4: #{chamfer_loss_forward.1} parent=1 // pred_region
      %s16 = ssub.s32 256, 256
      %17 = vsyncadd [#allocation3], %s16
      %s18 = sshll.u32 [#allocation2], 4
      %s19 = int_to_ptr.vmem [resolvable:$true] %s18
      %24 = dma.hbm_to_vmem [thread:$0]  %s0, 256, %s19, [#allocation3], 32, 32, 2
    $region5: #{chamfer_loss_forward.1} parent=1 // pred_fallthru
      _
    // Predicated region
    $region6: #{chamfer_loss_forward.1} parent=1 // pred_check
      _
    $region7: #{chamfer_loss_forward.1} parent=1 // pred_check_branch
      %26 = sbr.rel (0) target = $region9
    $region8: #{chamfer_loss_forward.1} parent=1 // pred_region
      %s28 = ssub.s32 256, 256
      %29 = vsyncadd [#allocation6], %s28
      %s30 = sshll.u32 [#allocation5], 4
      %s31 = int_to_ptr.vmem [resolvable:$true] %s30
      %36 = dma.hbm_to_vmem [thread:$0]  %s1, 256, %s31, [#allocation6], 32, 32, 2
    $region9: #{chamfer_loss_forward.1} parent=1 // pred_fallthru
      _
    // Predicated region
    $region10: #{chamfer_loss_forward.1} parent=1 // pred_check
      _
    $region11: #{chamfer_loss_forward.1} parent=1 // pred_check_branch
      %38 = sbr.rel (0) target = $region13
    $region12: #{chamfer_loss_forward.1} parent=1 // pred_region
      %39 = dma.done [#allocation3], 256
    $region13: #{chamfer_loss_forward.1} parent=1 // pred_fallthru
      _
    // Predicated region
    $region14: #{chamfer_loss_forward.1} parent=1 // pred_check
      _
    $region15: #{chamfer_loss_forward.1} parent=1 // pred_check_branch
      %41 = sbr.rel (0) target = $region17
    $region16: #{chamfer_loss_forward.1} parent=1 // pred_region
      %42 = dma.done [#allocation6], 256
    $region17: #{chamfer_loss_forward.1} parent=1 // pred_fallthru
      _
    %v44 = vld [vmem:[#allocation2] sm:$0x1]
    %v45 = vld [vmem:[#allocation2 + $0x2] sm:$0x1]
    %v46 = vld [vmem:[#allocation2 + $0x4] sm:$0x1]
    %v47 = vld [vmem:[#allocation2 + $0x6] sm:$0x1]
    %v48 = vld [vmem:[#allocation2 + $0x8] sm:$0x1]
    %v49 = vld [vmem:[#allocation2 + $0xa] sm:$0x1]
    %v50 = vld [vmem:[#allocation2 + $0xc] sm:$0x1]
    %v51 = vld [vmem:[#allocation2 + $0xe] sm:$0x1]
    %v52 = vld [vmem:[#allocation2 + $0x1] sm:$0x1]
    %v53 = vld [vmem:[#allocation2 + $0x3] sm:$0x1]
    %v54 = vld [vmem:[#allocation2 + $0x5] sm:$0x1]
    %v55 = vld [vmem:[#allocation2 + $0x7] sm:$0x1]
    %v56 = vld [vmem:[#allocation2 + $0x9] sm:$0x1]
    %v57 = vld [vmem:[#allocation2 + $0xb] sm:$0x1]
    %v58 = vld [vmem:[#allocation2 + $0xd] sm:$0x1]
    %v59 = vld [vmem:[#allocation2 + $0xf] sm:$0x1]
    %v68 = vrot.slane %v45, 7
    %vm69 = vcmask 1041409
    %v70 = vsel %vm69, %v68, %v44
    %v71 = vrot.slane %v46, 6
    %vm72 = vcmask 1042434
    %v73 = vsel %vm72, %v71, %v70
    %v74 = vrot.slane %v47, 5
    %vm75 = vcmask 1043459
    %v76 = vsel %vm75, %v74, %v73
    %v77 = vrot.slane %v48, 4
    %vm78 = vcmask 1044484
    %v79 = vsel %vm78, %v77, %v76
    %v80 = vrot.slane %v49, 3
    %vm81 = vcmask 1045509
    %v82 = vsel %vm81, %v80, %v79
    %v83 = vrot.slane %v50, 2
    %vm84 = vcmask 1046534
    %v85 = vsel %vm84, %v83, %v82
    %v86 = vrot.slane %v51, 1
    %vm87 = vcmask 1047559
    %v88 = vsel %vm87, %v86, %v85
    %v98 = vrot.slane %v53, 7
    %v99 = vsel %vm69, %v98, %v52
    %v100 = vrot.slane %v54, 6
    %v101 = vsel %vm72, %v100, %v99
    %v102 = vrot.slane %v55, 5
    %v103 = vsel %vm75, %v102, %v101
    %v104 = vrot.slane %v56, 4
    %v105 = vsel %vm78, %v104, %v103
    %v106 = vrot.slane %v57, 3
    %v107 = vsel %vm81, %v106, %v105
    %v108 = vrot.slane %v58, 2
    %v109 = vsel %vm84, %v108, %v107
    %v110 = vrot.slane %v59, 1
    %v111 = vsel %vm87, %v110, %v109
    %v113 = vld [vmem:[#allocation5] sm:$0x1]
    %v114 = vld [vmem:[#allocation5 + $0x2] sm:$0x1]
    %v115 = vld [vmem:[#allocation5 + $0x4] sm:$0x1]
    %v116 = vld [vmem:[#allocation5 + $0x6] sm:$0x1]
    %v117 = vld [vmem:[#allocation5 + $0x8] sm:$0x1]
    %v118 = vld [vmem:[#allocation5 + $0xa] sm:$0x1]
    %v119 = vld [vmem:[#allocation5 + $0xc] sm:$0x1]
    %v120 = vld [vmem:[#allocation5 + $0xe] sm:$0x1]
    %v121 = vld [vmem:[#allocation5 + $0x1] sm:$0x1]
    %v122 = vld [vmem:[#allocation5 + $0x3] sm:$0x1]
    %v123 = vld [vmem:[#allocation5 + $0x5] sm:$0x1]
    %v124 = vld [vmem:[#allocation5 + $0x7] sm:$0x1]
    %v125 = vld [vmem:[#allocation5 + $0x9] sm:$0x1]
    %v126 = vld [vmem:[#allocation5 + $0xb] sm:$0x1]
    %v127 = vld [vmem:[#allocation5 + $0xd] sm:$0x1]
    %v128 = vld [vmem:[#allocation5 + $0xf] sm:$0x1]
    %v137 = vrot.slane %v114, 7
    %v138 = vsel %vm69, %v137, %v113
    %v139 = vrot.slane %v115, 6
    %v140 = vsel %vm72, %v139, %v138
    %v141 = vrot.slane %v116, 5
    %v142 = vsel %vm75, %v141, %v140
    %v143 = vrot.slane %v117, 4
    %v144 = vsel %vm78, %v143, %v142
    %v145 = vrot.slane %v118, 3
    %v146 = vsel %vm81, %v145, %v144
    %v147 = vrot.slane %v119, 2
    %v148 = vsel %vm84, %v147, %v146
    %v149 = vrot.slane %v120, 1
    %v150 = vsel %vm87, %v149, %v148
    %v160 = vrot.slane %v122, 7
    %v161 = vsel %vm69, %v160, %v121
    %v162 = vrot.slane %v123, 6
    %v163 = vsel %vm72, %v162, %v161
    %v164 = vrot.slane %v124, 5
    %v165 = vsel %vm75, %v164, %v163
    %v166 = vrot.slane %v125, 4
    %v167 = vsel %vm78, %v166, %v165
    %v168 = vrot.slane %v126, 3
    %v169 = vsel %vm81, %v168, %v167
    %v170 = vrot.slane %v127, 2
    %v171 = vsel %vm84, %v170, %v169
    %v172 = vrot.slane %v128, 1
    %v173 = vsel %vm87, %v172, %v171
    %v175 = vmul.f32 %v88, %v88
    %v176 = vmul.f32 %v111, %v111
    %vm177 = vcmask 261120
    %v178 = vsel %vm177, %v175, 0.0
    %179 = vadd.xlane.f32.xlu0 %v178
    %v180 = vpop.xlane.xlu0 %179
    %v181 = vsel %vm177, %v176, 0.0
    %182 = vadd.xlane.f32.xlu0 %v181
    %v183 = vpop.xlane.xlu0 %182
    %v184 = vrsqrt.pop %v180
    %v185 = vmul.f32 %v180, %v184
    %vm186 = vcmp.eq.f32.partialorder %v180, inf
    %v187 = vsel %vm186, %v180, %v185
    %vm188 = vcmp.eq.f32.partialorder %v180, 0.0
    %v189 = vand.u32 %v180, 2147483648
    %v190 = vsel %vm188, %v189, %v187
    %v191 = vrsqrt.pop %v183
    %v192 = vmul.f32 %v183, %v191
    %vm193 = vcmp.eq.f32.partialorder %v183, inf
    %v194 = vsel %vm193, %v183, %v192
    %vm195 = vcmp.eq.f32.partialorder %v183, 0.0
    %v196 = vand.u32 %v183, 2147483648
    %v197 = vsel %vm195, %v196, %v194
    %vm198 = vcmask 7168
    %v199 = vsel %vm198, %v190, 0.0
    %v200 = vsel %vm198, %v197, 0.0
    %v201 = vadd.f32 %v199, %v200
    %202 = vadd.xlane.f32.xlu0 %v201
    %v203 = vpop.xlane.xlu0 %202
    %v204 = vrot.slane %v203, 4
    %v205 = vadd.f32 %v203, %v204
    %v206 = vrot.slane %v205, 2
    %v207 = vadd.f32 %v205, %v206
    %v208 = vrot.slane %v207, 1
    %v209 = vadd.f32 %v207, %v208
    %s210 = vtos %v209
    %v211 = vstv %s210
    %v212 = vrcp.pop 16.0
    %v213 = vmul.f32 %v211, %v212
    %v214 = vmul.f32 %v150, %v150
    %v215 = vmul.f32 %v173, %v173
    %v216 = vsel %vm177, %v214, 0.0
    %217 = vadd.xlane.f32.xlu0 %v216
    %v218 = vpop.xlane.xlu0 %217
    %v219 = vsel %vm177, %v215, 0.0
    %220 = vadd.xlane.f32.xlu0 %v219
    %v221 = vpop.xlane.xlu0 %220
    %v222 = vrsqrt.pop %v218
    %v223 = vmul.f32 %v218, %v222
    %vm224 = vcmp.eq.f32.partialorder %v218, inf
    %v225 = vsel %vm224, %v218, %v223
    %vm226 = vcmp.eq.f32.partialorder %v218, 0.0
    %v227 = vand.u32 %v218, 2147483648
    %v228 = vsel %vm226, %v227, %v225
    %v229 = vrsqrt.pop %v221
    %v230 = vmul.f32 %v221, %v229
    %vm231 = vcmp.eq.f32.partialorder %v221, inf
    %v232 = vsel %vm231, %v221, %v230
    %vm233 = vcmp.eq.f32.partialorder %v221, 0.0
    %v234 = vand.u32 %v221, 2147483648
    %v235 = vsel %vm233, %v234, %v232
    %v236 = vsel %vm198, %v228, 0.0
    %v237 = vsel %vm198, %v235, 0.0
    %v238 = vadd.f32 %v236, %v237
    %239 = vadd.xlane.f32.xlu0 %v238
    %v240 = vpop.xlane.xlu0 %239
    %v241 = vrot.slane %v240, 4
    %v242 = vadd.f32 %v240, %v241
    %v243 = vrot.slane %v242, 2
    %v244 = vadd.f32 %v242, %v243
    %v245 = vrot.slane %v244, 1
    %v246 = vadd.f32 %v244, %v245
    %s247 = vtos %v246
    %v248 = vstv %s247
    %v249 = vmul.f32 %v248, %v212
    %v250 = vpack.c.bf16 %v111, %v88
    %v251 = vpack.c.bf16 %v173, %v150
    %v253 = vsel %vm177, %v250, 0
    %v256 = vsel %vm177, %v251, 0
    %258 = vmatprep.subr.bf16.mxu0 0
    %259 = vmatpush1.bf16.xpose.msra.mxu0 0
    %260 = vmatprep.subr.bf16.mxu0 0
    %261 = vmatpush1.bf16.xpose.msra.mxu0 0
    %262 = vmatprep.subr.bf16.mxu0 0
    %263 = vmatpush1.bf16.xpose.msra.mxu0 0
    %264 = vmatprep.subr.bf16.mxu0 0
    %265 = vmatpush1.bf16.xpose.msra.mxu0 0
    %266 = vmatprep.subr.bf16.mxu0 0
    %267 = vmatpush1.bf16.xpose.msra.mxu0 0
    %268 = vmatprep.subr.bf16.mxu0 0
    %269 = vmatpush1.bf16.xpose.msra.mxu0 0
    %270 = vmatprep.subr.bf16.mxu0 0
    %271 = vmatpush1.bf16.xpose.msra.mxu0 0
    %272 = vmatprep.subr.bf16.mxu0 0
    %273 = vmatpush1.bf16.xpose.msra.mxu0 %v256
    %274 = vmatprep.subr.bf16.mxu0 0
    %275 = vmatpush2.bf16.xpose.msra.mxu0 0
    %276 = vmatprep.subr.bf16.mxu0 0
    %277 = vmatpush2.bf16.xpose.msra.mxu0 0
    %278 = vmatprep.subr.bf16.mxu0 0
    %279 = vmatpush2.bf16.xpose.msra.mxu0 0
    %280 = vmatprep.subr.bf16.mxu0 0
    %281 = vmatpush2.bf16.xpose.msra.mxu0 0
    %282 = vmatprep.subr.bf16.mxu0 0
    %283 = vmatpush2.bf16.xpose.msra.mxu0 0
    %284 = vmatprep.subr.bf16.mxu0 0
    %285 = vmatpush2.bf16.xpose.msra.mxu0 0
    %286 = vmatprep.subr.bf16.mxu0 0
    %287 = vmatpush2.bf16.xpose.msra.mxu0 0
    %288 = vmatprep.subr.bf16.mxu0 0
    %289 = vmatpush2.bf16.xpose.msra.mxu0 0
    %290 = vmatprep.mubr.bf16.mxu0 0
    %291 = vmatmul.mubr.bf16.gmra.mxu0 %v253
    %v292 = vpop.f32.mrf.mxu0
    %v293 = vadd.f32 0.0, %v292
    %v294 = vpop.f32.mrf.mxu0
    %v295 = vpop.f32.mrf.mxu0
    %v296 = vadd.f32 0.0, %v295
    %v297 = vpop.f32.mrf.mxu0
    %298 = vdwg.mxu0
    %301 = vrot.lane.b32.xlu0 %v293, 120
    %v302 = vpop.permute.xlu0 %301
    %303 = vrot.lane.b32.xlu0 %v296, 120
    %v304 = vpop.permute.xlu0 %303
    %v307 = vmax.f32 %v293, %v302
    %v308 = vmax.f32 %v296, %v304
    %v309 = vadd.f32 %v307, %v308
    %v310 = vmax.f32 %v293, %v296
    %312 = vrot.lane.b32.xlu0 %v310, 120
    %v313 = vpop.permute.xlu0 %312
    %v315 = vadd.f32 %v310, %v313
    %v316 = vadd.f32 %v309, %v315
    %v317 = vmul.f32 %v316, 0.25
    %vm318 = vcmask 64512
    %319 = vst.msk [vmem:[#allocation7] sm:$0xff] %vm318, %v317
    %v320 = vlaneseq
    %v321 = vshrl.u32 %v320, 7
    %v322 = vlaneseq
    %v323 = vand.u32 %v322, 127
    %vm324 = vcmp.eq.s32.totalorder %v321, %v323
    %v325 = vsel %vm324, %v317, 0.0
    %v326 = vsel %vm318, %v325, 0.0
    %327 = vadd.xlane.f32.xlu0 %v326
    %v328 = vpop.xlane.xlu0 %327
    %v329 = vrot.slane %v326, 4
    %v330 = vadd.f32 %v326, %v329
    %v331 = vrot.slane %v330, 2
    %v332 = vadd.f32 %v330, %v331
    %v333 = vrot.slane %v332, 1
    %v334 = vadd.f32 %v332, %v333
    %335 = vst.msk [vmem:[%s3] sm:$0xff] %vm198, %v328
    %v336 = vadd.f32 %v317, 0.2
    %v337 = vsub.f32 %v336, %v328
    %v338 = vmax.f32 %v337, 0.0
    %v339 = vsel %vm324, 0.0, %v338
    %v340 = vsub.f32 %v336, %v334
    %v341 = vmax.f32 %v340, 0.0
    %v342 = vsel %vm324, 0.0, %v341
    %v343 = vsel %vm318, %v339, 0.0
    %344 = vadd.xlane.f32.xlu0 %v343
    %v345 = vpop.xlane.xlu0 %344
    %v346 = vrot.slane %v345, 4
    %v347 = vadd.f32 %v345, %v346
    %v348 = vrot.slane %v347, 2
    %v349 = vadd.f32 %v347, %v348
    %v350 = vrot.slane %v349, 1
    %v351 = vadd.f32 %v349, %v350
    %s352 = vtos %v351
    %v353 = vstv %s352
    %v354 = vrcp.pop 64.0
    %v355 = vmul.f32 %v353, %v354
    %v356 = vsel %vm318, %v342, 0.0
    %357 = vadd.xlane.f32.xlu0 %v356
    %v358 = vpop.xlane.xlu0 %357
    %v359 = vrot.slane %v358, 4
    %v360 = vadd.f32 %v358, %v359
    %v361 = vrot.slane %v360, 2
    %v362 = vadd.f32 %v360, %v361
    %v363 = vrot.slane %v362, 1
    %v364 = vadd.f32 %v362, %v363
    %s365 = vtos %v364
    %v366 = vstv %s365
    %v367 = vmul.f32 %v366, %v354
    %vm368 = vcmp.eq.s32.totalorder %v323, 0
    %v369 = vsel %vm368, %v355, 0.0
    %vm370 = vcmp.eq.s32.totalorder %v323, 1
    %v371 = vsel %vm370, %v367, 0.0
    %v372 = vadd.f32 %v369, %v371
    %vm373 = vcmp.eq.s32.totalorder %v323, 2
    %v374 = vsel %vm373, %v213, 0.0
    %v375 = vadd.f32 %v372, %v374
    %vm376 = vcmp.eq.s32.totalorder %v323, 3
    %v377 = vsel %vm376, %v249, 0.0
    %v378 = vadd.f32 %v375, %v377
    %vm379 = vcmask 24576
    %380 = vst.msk [vmem:[%s4] sm:$0x1] %vm379, %v378
    // Predicated region
    $region18: #{chamfer_loss_forward.1} parent=1 // pred_check
      _
    $region19: #{chamfer_loss_forward.1} parent=1 // pred_check_branch
      %382 = sbr.rel (0) target = $region21
    $region20: #{chamfer_loss_forward.1} parent=1 // pred_region
      %s384 = ssub.s32 128, 128
      %385 = vsyncadd [#allocation4], %s384
      %s387 = sshll.u32 [#allocation7], 4
      %s388 = int_to_ptr.vmem [resolvable:$true] %s387
      %390 = dma.vmem_to_hbm [thread:$0]  %s388, 128, %s2, [#allocation4]
    $region21: #{chamfer_loss_forward.1} parent=1 // pred_fallthru
      _
    // Predicated region
    $region22: #{chamfer_loss_forward.1} parent=1 // pred_check
      _
    $region23: #{chamfer_loss_forward.1} parent=1 // pred_check_branch
      %392 = sbr.rel (0) target = $region25
    $region24: #{chamfer_loss_forward.1} parent=1 // pred_region
      _
    $region25: #{chamfer_loss_forward.1} parent=1 // pred_fallthru
      _
    // Predicated region
    $region26: #{chamfer_loss_forward.1} parent=1 // pred_check
      _
    $region27: #{chamfer_loss_forward.1} parent=1 // pred_check_branch
      %394 = sbr.rel (0) target = $region29
    $region28: #{chamfer_loss_forward.1} parent=1 // pred_region
      _
    $region29: #{chamfer_loss_forward.1} parent=1 // pred_fallthru
      _
    // Predicated region
    $region30: #{chamfer_loss_forward.1} parent=1 // pred_check
      _
    $region31: #{chamfer_loss_forward.1} parent=1 // pred_check_branch
      %396 = sbr.rel (0) target = $region33
    $region32: #{chamfer_loss_forward.1} parent=1 // pred_region
      %397 = dma.done [#allocation4], 128
    $region33: #{chamfer_loss_forward.1} parent=1 // pred_fallthru
      _
    // Predicated region
    $region34: #{chamfer_loss_forward.1} parent=1 // pred_check
      _
    $region35: #{chamfer_loss_forward.1} parent=1 // pred_check_branch
      %399 = sbr.rel (0) target = $region37
    $region36: #{chamfer_loss_forward.1} parent=1 // pred_region
      _
    $region37: #{chamfer_loss_forward.1} parent=1 // pred_fallthru
      _
    // Predicated region
    $region38: #{chamfer_loss_forward.1} parent=1 // pred_check
      _
    $region39: #{chamfer_loss_forward.1} parent=1 // pred_check_branch
      %401 = sbr.rel (0) target = $region41
    $region40: #{chamfer_loss_forward.1} parent=1 // pred_region
      _
    $region41: #{chamfer_loss_forward.1} parent=1 // pred_fallthru
      _
    %402 = vsyncpa [#allocation3], 1
    %403 = vsyncpa [#allocation6], 1
    %404 = vsyncpa [#allocation4], 1

</llo_original>
